<compile_context>
chip_gen: v5e
topology: v5e:2x2
jax: 0.10.0
libtpu: 0.0.40
codegen_flags: <defaults>
</compile_context>

<pallas_src>
import jax
import jax.numpy as jnp
from jax.experimental import pallas as pl
from jax.experimental.pallas import tpu as pltpu

NEG_SLOPE = 0.01           # F.leaky_relu default
MASK_NEG = -1e30           # finite "minus infinity" (avoids inf-inf NaNs)


def _vmem_limit_bytes():
    # ~48 MiB on v7x (64 MiB physical), ~96 MiB on v5e/v6e (128 MiB physical)
    try:
        cap = pltpu.get_tpu_info().vmem_capacity_bytes
        return int(min(cap * 3 // 4, 100 * 1024 * 1024))
    except Exception:
        return 64 * 1024 * 1024


_VMEM_LIMIT = _vmem_limit_bytes()


def _params(dims):
    return pltpu.CompilerParams(dimension_semantics=dims,
                                vmem_limit_bytes=_VMEM_LIMIT)


def _leaky_relu(x):
    return jnp.where(x >= 0, x, NEG_SLOPE * x)


def _l2_normalize(x):
    # F.normalize: x / max(||x||_2, eps); divide -> EUP approx reciprocal
    norm = jnp.sqrt(jnp.sum(x * x, axis=-1, keepdims=True))
    return x * pl.reciprocal(jnp.maximum(norm, 1e-12), approx=True)


def _round_up(n, m):
    return ((n + m - 1) // m) * m


def _block_and_pad(n, target=256):
    """(block_size, padded_n): block=target if n>=target else n rounded to 8."""
    if n >= target:
        return target, _round_up(n, target)
    b = _round_up(max(n, 8), 8)
    return b, b


def _pad_to_rows(x, rows):
    pad = rows - x.shape[0]
    if pad > 0:
        x = jnp.pad(x, ((0, pad),) + ((0, 0),) * (x.ndim - 1))
    return x


# ---------------------------------------------------------------------------
# Kernel 1a: row-tiled video projection: leaky_relu(feat @ Wt + bt)
#            emits (un-normalized latent, L2-normalized latent), both bf16.
# ---------------------------------------------------------------------------
def prep_video_kernel(feat_ref, wt_ref, bt_ref, vlat_ref, vnorm_ref):
    v = _leaky_relu(jnp.dot(feat_ref[...], wt_ref[...],
                            preferred_element_type=jnp.float32) + bt_ref[...])
    vlat_ref[...] = v.astype(jnp.bfloat16)
    vnorm_ref[...] = _l2_normalize(v).astype(jnp.bfloat16)


# ---------------------------------------------------------------------------
# Kernel 1b: row-tiled L2 normalize of the user/hashtag embedding table
# ---------------------------------------------------------------------------
def prep_emb_kernel(emb_ref, out_ref):
    out_ref[...] = _l2_normalize(emb_ref[...]).astype(jnp.bfloat16)


# ---------------------------------------------------------------------------
# Kernel 2a: row-tiled linear  h = x @ W           (bf16 in, bf16 out)
# Kernel 2b: row-tiled linear emitting h and h^T   (pre-transposed GAT keys)
# ---------------------------------------------------------------------------
def linear_kernel(x_ref, w_ref, h_ref):
    h_ref[...] = jnp.dot(x_ref[...], w_ref[...],
                         preferred_element_type=jnp.float32).astype(jnp.bfloat16)


def linear_t_kernel(x_ref, w_ref, h_ref, ht_ref):
    h = jnp.dot(x_ref[...], w_ref[...], preferred_element_type=jnp.float32)
    h_ref[...] = h.astype(jnp.bfloat16)
    ht_ref[...] = jnp.transpose(h).astype(jnp.bfloat16)   # one XLU transpose / block


# ---------------------------------------------------------------------------
# Kernel 3: K-tiled GAT aggregation (masked dot-product attention,
#           online softmax).  grid = (row_blocks, key_blocks).
#   hq_ref  : (RB, D)  bf16 query rows of this row block
#   ht_ref  : (D, KB)  bf16 pre-transposed keys of this key block
#   hk_ref  : (KB, D)  bf16 values of this key block
#   mask_ref: (RB, KB) int8 {0,1} adjacency tile (messages INTO these rows)
# ---------------------------------------------------------------------------
def gat_kernel(hq_ref, ht_ref, hk_ref, mask_ref, out_ref, m_sc, l_sc, acc_sc):
    k = pl.program_id(1)

    @pl.when(k == 0)
    def _():
        m_sc[...] = jnp.full_like(m_sc, MASK_NEG)
        l_sc[...] = jnp.zeros_like(l_sc)
        acc_sc[...] = jnp.zeros_like(acc_sc)

    valid = mask_ref[...] > 0
    s = jnp.dot(hq_ref[...], ht_ref[...],
                preferred_element_type=jnp.float32)          # (RB, KB) f32
    s = jnp.where(valid, s, MASK_NEG)

    m_prev = m_sc[...]
    m_new = jnp.maximum(m_prev, jnp.max(s, axis=-1, keepdims=True))
    alpha = jnp.exp(m_prev - m_new)
    p = jnp.where(valid, jnp.exp(s - m_new), 0.0)
    l_sc[...] = alpha * l_sc[...] + jnp.sum(p, axis=-1, keepdims=True)
    acc_sc[...] = alpha * acc_sc[...] + jnp.dot(
        p.astype(jnp.bfloat16), hk_ref[...], preferred_element_type=jnp.float32)
    m_sc[...] = m_new

    @pl.when(k == pl.num_programs(1) - 1)
    def _():
        # zero-in-degree rows: l==0, acc==0 -> output 0
        inv = pl.reciprocal(jnp.maximum(l_sc[...], 1e-12), approx=True)
        out_ref[...] = _leaky_relu(acc_sc[...] * inv).astype(out_ref.dtype)


# ---------------------------------------------------------------------------
# Kernel 4: row-tiled SAGE (mean aggregation), xW precomputed:
#           out = leaky_relu(adj_mean_block @ (x @ W))
# ---------------------------------------------------------------------------
def sage_kernel(adj_ref, xw_ref, out_ref):
    out = jnp.dot(adj_ref[...], xw_ref[...], preferred_element_type=jnp.float32)
    out_ref[...] = _leaky_relu(out).astype(out_ref.dtype)


# ---------------------------------------------------------------------------
# Kernel 5: batch-tiled scoring (fusion layers + dot scores), (2, B) output.
#   w_user = concat([Wuv[D:], Wuh[D:]], axis=1)  (D, 2D)  (batched user proj)
#   w_v    = Wuv[:D], w_h = Wuh[:D]
# ---------------------------------------------------------------------------
def score_kernel(user_ref, pos_ref, neg_ref, vlat_ref,
                 wu_ref, wv_ref, wh_ref, buv_ref, buh_ref, out_ref):
    bb, D = user_ref.shape
    u2 = jnp.dot(user_ref[...], wu_ref[...],
                 preferred_element_type=jnp.float32)              # (bb, 2D)
    user_uv = u2[:, 0:D]
    user_uh = u2[:, D:2 * D]

    usv = _leaky_relu(jnp.dot(vlat_ref[...], wv_ref[...],
                              preferred_element_type=jnp.float32)
                      + user_uv + buv_ref[...])

    pn = jnp.concatenate([pos_ref[...], neg_ref[...]], axis=0)     # (2bb, D) bf16
    ph = jnp.dot(pn, wh_ref[...], preferred_element_type=jnp.float32)
    usp = _leaky_relu(ph[0:bb] + user_uh + buh_ref[...])
    usn = _leaky_relu(ph[bb:2 * bb] + user_uh + buh_ref[...])

    out_ref[...] = jnp.stack([jnp.sum(usv * usp, axis=1),
                              jnp.sum(usv * usn, axis=1)], axis=0)  # (2, bb)


# ---------------------------------------------------------------------------
# pallas_call wrappers (argument order == in_specs order == kernel arg order)
# ---------------------------------------------------------------------------
def run_prep_emb(emb, rb):
    n, d = emb.shape
    return pl.pallas_call(
        prep_emb_kernel,
        out_shape=jax.ShapeDtypeStruct((n, d), jnp.bfloat16),
        grid=(n // rb,),
        in_specs=[pl.BlockSpec((rb, d), lambda i: (i, 0))],
        out_specs=pl.BlockSpec((rb, d), lambda i: (i, 0)),
        compiler_params=_params(("parallel",)),
    )(emb)


def run_prep_video(feat_b, wt_b, bt, rb):
    nv, df = feat_b.shape
    d = wt_b.shape[1]
    return pl.pallas_call(
        prep_video_kernel,
        out_shape=(jax.ShapeDtypeStruct((nv, d), jnp.bfloat16),
                   jax.ShapeDtypeStruct((nv, d), jnp.bfloat16)),
        grid=(nv // rb,),
        in_specs=[pl.BlockSpec((rb, df), lambda i: (i, 0)),
                  pl.BlockSpec((df, d), lambda i: (0, 0)),
                  pl.BlockSpec((1, d), lambda i: (0, 0))],
        out_specs=(pl.BlockSpec((rb, d), lambda i: (i, 0)),
                   pl.BlockSpec((rb, d), lambda i: (i, 0))),
        compiler_params=_params(("parallel",)),
    )(feat_b, wt_b, bt)


def run_linear(x, w_b, rb):
    n, d = x.shape
    dout = w_b.shape[1]
    return pl.pallas_call(
        linear_kernel,
        out_shape=jax.ShapeDtypeStruct((n, dout), jnp.bfloat16),
        grid=(n // rb,),
        in_specs=[pl.BlockSpec((rb, d), lambda i: (i, 0)),
                  pl.BlockSpec((d, dout), lambda i: (0, 0))],
        out_specs=pl.BlockSpec((rb, dout), lambda i: (i, 0)),
        compiler_params=_params(("parallel",)),
    )(x, w_b)


def run_linear_t(x, w_b, rb):
    n, d = x.shape
    dout = w_b.shape[1]
    return pl.pallas_call(
        linear_t_kernel,
        out_shape=(jax.ShapeDtypeStruct((n, dout), jnp.bfloat16),
                   jax.ShapeDtypeStruct((dout, n), jnp.bfloat16)),
        grid=(n // rb,),
        in_specs=[pl.BlockSpec((rb, d), lambda i: (i, 0)),
                  pl.BlockSpec((d, dout), lambda i: (0, 0))],
        out_specs=(pl.BlockSpec((rb, dout), lambda i: (i, 0)),
                   pl.BlockSpec((dout, rb), lambda i: (0, i))),
        compiler_params=_params(("parallel",)),
    )(x, w_b)


def run_gat(h, h_t, mask_i8, rb, kb):
    n, d = h.shape
    return pl.pallas_call(
        gat_kernel,
        out_shape=jax.ShapeDtypeStruct((n, d), jnp.bfloat16),
        grid=(n // rb, n // kb),
        in_specs=[pl.BlockSpec((rb, d), lambda i, k: (i, 0)),    # hq
                  pl.BlockSpec((d, kb), lambda i, k: (0, k)),    # h^T (keys)
                  pl.BlockSpec((kb, d), lambda i, k: (k, 0)),    # h (values)
                  pl.BlockSpec((rb, kb), lambda i, k: (i, k))],  # mask tile
        out_specs=pl.BlockSpec((rb, d), lambda i, k: (i, 0)),
        scratch_shapes=[pltpu.VMEM((rb, 1), jnp.float32),        # m
                        pltpu.VMEM((rb, 1), jnp.float32),        # l
                        pltpu.VMEM((rb, d), jnp.float32)],       # acc
        compiler_params=_params(("parallel", "arbitrary")),
    )(h, h_t, h, mask_i8)


def run_sage(adj_mean_b, xw, rb):
    n, d = xw.shape
    return pl.pallas_call(
        sage_kernel,
        out_shape=jax.ShapeDtypeStruct((n, d), jnp.bfloat16),
        grid=(n // rb,),
        in_specs=[pl.BlockSpec((rb, n), lambda i: (i, 0)),       # adj rows
                  pl.BlockSpec((n, d), lambda i: (0, 0))],       # xW (resident)
        out_specs=pl.BlockSpec((rb, d), lambda i: (i, 0)),
        compiler_params=_params(("parallel",)),
    )(adj_mean_b, xw)


def run_scores(user_emb, pos_emb, neg_emb, vlat_b, w_user, w_v, w_h, buv, buh):
    B, D = user_emb.shape
    bb, Bp = _block_and_pad(B, target=128)

    def prep(a):
        return _pad_to_rows(a.astype(jnp.bfloat16), Bp)

    user_b, pos_b, neg_b, vl_b = map(prep, (user_emb, pos_emb, neg_emb, vlat_b))
    scores = pl.pallas_call(
        score_kernel,
        out_shape=jax.ShapeDtypeStruct((2, Bp), jnp.float32),
        grid=(Bp // bb,),
        in_specs=[pl.BlockSpec((bb, D), lambda i: (i, 0)),
                  pl.BlockSpec((bb, D), lambda i: (i, 0)),
                  pl.BlockSpec((bb, D), lambda i: (i, 0)),
                  pl.BlockSpec((bb, D), lambda i: (i, 0)),
                  pl.BlockSpec(w_user.shape, lambda i: (0, 0)),
                  pl.BlockSpec(w_v.shape, lambda i: (0, 0)),
                  pl.BlockSpec(w_h.shape, lambda i: (0, 0)),
                  pl.BlockSpec(buv.shape, lambda i: (0, 0)),
                  pl.BlockSpec(buh.shape, lambda i: (0, 0))],
        out_specs=pl.BlockSpec((2, bb), lambda i: (0, i)),
        compiler_params=_params(("parallel",)),
    )(user_b, pos_b, neg_b, vl_b, w_user, w_v, w_h, buv, buh)
    return scores[0, :B], scores[1, :B]


# ---------------------------------------------------------------------------
# Graph preprocessing (plain JAX glue, done once per forward)
# ---------------------------------------------------------------------------
def edges_to_adj(edge_index, n):
    """edge_index[0]=src, edge_index[1]=dst; A[dst, src] = 1 (src -> dst)."""
    src, dst = edge_index[0], edge_index[1]
    return jnp.zeros((n, n), jnp.float32).at[dst, src].set(1.0)


def edges_to_mask_int8(edge_index, n):
    src, dst = edge_index[0], edge_index[1]
    return jnp.zeros((n, n), jnp.int8).at[dst, src].set(1)


# ---------------------------------------------------------------------------
# Full forward
# ---------------------------------------------------------------------------
def net_forward(item, features, u_h_embedding, uh_edge_index, v_uh_edge_index,
                params, num_user, num_hashtag):
    Wt, bt, W1, W2, W3, W4, Wuv, buv, Wuh, buh = params
    D = Wt.shape[1]
    Nuh = num_user + num_hashtag
    Nv = features.shape[0]
    N = Nuh + Nv

    # --- pre-cast weights to bf16 once (no per-step casts inside kernels) ---
    Wt_b, W1_b, W2_b, W3_b, W4_b = (w.astype(jnp.bfloat16)
                                    for w in (Wt, W1, W2, W3, W4))
    w_user = jnp.concatenate([Wuv[D:], Wuh[D:]], axis=1).astype(jnp.bfloat16)
    w_v = Wuv[:D].astype(jnp.bfloat16)
    w_h = Wuh[:D].astype(jnp.bfloat16)

    # --- block sizes / padded node count ---
    RB, Np = _block_and_pad(N)            # node row/key block + padded N
    RBE, Nuh_p = _block_and_pad(Nuh)
    RBV, Nv_p = _block_and_pad(Nv)

    # --- dense adjacencies at padded size: GAT mask int8, SAGE mean bf16 ---
    mask_vuh = edges_to_mask_int8(v_uh_edge_index, Np)
    adj_uh = edges_to_adj(uh_edge_index, Np)
    adj_uh_mean = (adj_uh / jnp.maximum(adj_uh.sum(axis=1, keepdims=True), 1.0)
                   ).astype(jnp.bfloat16)
    # TODO(synk): edges are deduplicated (.set); use .add + recomputed degrees
    #             if the reference SAGEConv counts multi-edges.

    # --- node prep (tiled) ---
    u_norm = run_prep_emb(_pad_to_rows(u_h_embedding, Nuh_p), RBE)[:Nuh]
    feat_b = _pad_to_rows(features.astype(jnp.bfloat16), Nv_p)
    vlat, v_norm = run_prep_video(feat_b, Wt_b, bt, RBV)
    vlat, v_norm = vlat[:Nv], v_norm[:Nv]
    x0 = _pad_to_rows(jnp.concatenate([u_norm, v_norm], axis=0), Np)  # bf16

    # --- GNN layers: GAT(v_uh) -> SAGE(uh) -> GAT(v_uh) -> SAGE(uh) ---
    def gat_layer(x, w_b):
        h, h_t = run_linear_t(x, w_b, RB)
        return run_gat(h, h_t, mask_vuh, RB, RB)

    def sage_layer(x, w_b):
        xw = run_linear(x, w_b, RB)
        return run_sage(adj_uh_mean, xw, RB)

    x1 = gat_layer(x0, W1_b)
    x2 = sage_layer(x1, W2_b)
    x3 = gat_layer(x2, W3_b)
    x4 = sage_layer(x3, W4_b)

    result_embed = x4[:Nuh]                       # (Nuh, D) bf16

    # --- batch gathers (plain JAX glue) ---
    user_emb = result_embed[item[:, 0]]
    pos_emb = result_embed[item[:, 2]]
    neg_emb = result_embed[item[:, 3]]
    vlat_batch = vlat[item[:, 1] - Nuh]           # reuse projected latents

    return run_scores(user_emb, pos_emb, neg_emb, vlat_batch,
                      w_user, w_v, w_h, buv, buh)


# ---------------------------------------------------------------------------
# Main
# ---------------------------------------------------------------------------
if __name__ == "__main__":
    num_user, num_hashtag, num_video = 128, 128, 256
    dim_feat, dim_latent = 256, 128
    batch = 128
    Nuh = num_user + num_hashtag
    N = Nuh + num_video

    key = jax.random.PRNGKey(0)
    keys = jax.random.split(key, 16)

    def xavier(k, shape):
        std = (2.0 / (shape[0] + shape[1])) ** 0.5
        return std * jax.random.normal(k, shape, jnp.float32)

    features = jax.random.normal(keys[0], (num_video, dim_feat), jnp.float32)
    u_h_embedding = xavier(keys[1], (Nuh, dim_latent))
    Wt = xavier(keys[2], (dim_feat, dim_latent))
    bt = 0.01 * jax.random.normal(keys[3], (1, dim_latent), jnp.float32)
    W1 = xavier(keys[4], (dim_latent, dim_latent))
    W2 = xavier(keys[5], (dim_latent, dim_latent))
    W3 = xavier(keys[6], (dim_latent, dim_latent))
    W4 = xavier(keys[7], (dim_latent, dim_latent))
    Wuv = xavier(keys[8], (2 * dim_latent, dim_latent))
    buv = 0.01 * jax.random.normal(keys[9], (1, dim_latent), jnp.float32)
    Wuh = xavier(keys[10], (2 * dim_latent, dim_latent))
    buh = 0.01 * jax.random.normal(keys[11], (1, dim_latent), jnp.float32)
    params = (Wt, bt, W1, W2, W3, W4, Wuv, buv, Wuh, buh)

    uh_edge_index = jnp.stack([
        jax.random.randint(keys[12], (2048,), 0, Nuh),
        jax.random.randint(keys[13], (2048,), 0, Nuh)]).astype(jnp.int32)
    v_uh_edge_index = jnp.stack([
        jax.random.randint(keys[14], (4096,), 0, N),
        jax.random.randint(keys[15], (4096,), 0, N)]).astype(jnp.int32)

    # item batch: columns = [user, video, pos_hashtag, neg_hashtag]
    ik = jax.random.split(jax.random.PRNGKey(1), 4)
    item = jnp.concatenate([
        jax.random.randint(ik[0], (batch, 1), 0, num_user),
        jax.random.randint(ik[1], (batch, 1), Nuh, Nuh + num_video),
        jax.random.randint(ik[2], (batch, 1), num_user, Nuh),
        jax.random.randint(ik[3], (batch, 1), num_user, Nuh)], axis=1).astype(jnp.int32)

    pos_scores, neg_scores = net_forward(
        item, features, u_h_embedding, uh_edge_index, v_uh_edge_index,
        params, num_user, num_hashtag)
    jax.block_until_ready((pos_scores, neg_scores))
    assert pos_scores.shape == (batch,) and neg_scores.shape == (batch,)
    assert bool(jnp.all(jnp.isfinite(pos_scores)))
    assert bool(jnp.all(jnp.isfinite(neg_scores)))
    print("KERNEL_OK")
</pallas_src>

<mosaic_0001>
module attributes {stable_mosaic.version = 11 : i64} {
  func.func @prep_emb_kernel(%arg0: i32, %arg1: memref<256x128xf32, #tpu.memory_space<vmem>>, %arg2: memref<256x128xbf16, #tpu.memory_space<vmem>>) attributes {dimension_semantics = [#tpu.dimension_semantics<parallel>], iteration_bounds = array<i64: 1>, scalar_prefetch = 0 : i64, scratch_operands = 0 : i64, tpu.core_type = #tpu.core_type<tc>, window_params = [{transform_indices = @transform_0, window_bounds = array<i64: 256, 128>}, {transform_indices = @transform_1, window_bounds = array<i64: 256, 128>}]} {
    %c0 = arith.constant 0 : index
    %c0_0 = arith.constant 0 : index
    %0 = vector.load %arg1[%c0, %c0_0] : memref<256x128xf32, #tpu.memory_space<vmem>>, vector<256x128xf32>
    %1 = arith.mulf %0, %0 : vector<256x128xf32>
    %cst = arith.constant dense<0.000000e+00> : vector<256xf32>
    %2 = vector.multi_reduction <add>, %1, %cst [1] : vector<256x128xf32> to vector<256xf32>
    %3 = vector.shape_cast %2 : vector<256xf32> to vector<256x1xf32>
    %4 = math.sqrt %3 : vector<256x1xf32>
    %cst_1 = arith.constant 9.99999996E-13 : f32
    %5 = vector.broadcast %cst_1 : f32 to vector<256x1xf32>
    %6 = arith.maximumf %4, %5 : vector<256x1xf32>
    %7 = tpu.reciprocal %6 {approx = true} : vector<256x1xf32> -> vector<256x1xf32>
    %8 = vector.broadcast %7 : vector<256x1xf32> to vector<256x128xf32>
    %9 = arith.mulf %0, %8 : vector<256x128xf32>
    %10 = arith.truncf %9 : vector<256x128xf32> to vector<256x128xbf16>
    %c0_2 = arith.constant 0 : index
    %c0_3 = arith.constant 0 : index
    %11 = vector.load %arg2[%c0_2, %c0_3] : memref<256x128xbf16, #tpu.memory_space<vmem>>, vector<256x128xbf16>
    tpu.vector_store %arg2[%c0_2, %c0_3], %10 {strides = array<i32>} : memref<256x128xbf16, #tpu.memory_space<vmem>>, vector<256x128xbf16>,
    return
  }
  func.func @transform_0(%arg0: i32) -> (i32, i32) {
    %c0_i32 = arith.constant 0 : i32
    %c0_i32_0 = arith.constant 0 : i32
    return %arg0, %c0_i32 : i32, i32
  }
  func.func @transform_1(%arg0: i32) -> (i32, i32) {
    %c0_i32 = arith.constant 0 : i32
    %c0_i32_0 = arith.constant 0 : i32
    return %arg0, %c0_i32 : i32, i32
  }
}

</mosaic_0001>

<llo_original>
// kernel: tpu_custom_call.1
$region0: #{tpu_custom_call.1}
  #allocation0 [shape = 'u32[]', space=smem, size = 0x4, offset = 0x4, fixed_abs, tag = 'smem constant byte address 0x4 - core index']
  #allocation1 [shape = 'u32[72,128]{1,0:T(1,128)}', space=vmem, size = 0x9000, scoped, tag = 'internal scratch']
  %s0 = inlined_call_operand.hbm [shape: f32[256,128], index: 0, kind: input, shape index: {}]
  %s1 = inlined_call_operand.hbm [shape: bf16[256,128], index: 1, kind: output, shape index: {}]
  %s2 = sld [smem:[#allocation0]]
  $region18: #{tpu_custom_call.1} parent=0
    _
  %s4 = ssub.s32 1, %s2
  %s5 = scalar_select 0, %s4, %s2
  $region1: #{tpu_custom_call.1} parent=0
    #allocation2 [shape = 'u8[131072]{0}', space=vmem, size = 0x20000, scoped, tag = 'input window, operand 0, single buffered']
    #allocation3 [shape = 's32[1]{0}', space=sflag, size = 0x4, scoped, tag = 'scoped memory for tpu_custom_call.1']
    #allocation4 [shape = 's32[1]{0}', space=sflag, size = 0x4, scoped, tag = 'scoped memory for tpu_custom_call.1']
    #allocation5 [shape = 'u8[65536]{0}', space=vmem, size = 0x10000, scoped, tag = 'output window, operand 0, single buffered']
    %6 = vsyncpa [#allocation3], 0
    %7 = vsyncpa [#allocation4], 0
    // Predicated region
    $region2: #{tpu_custom_call.1} parent=1 // pred_check
      _
    $region3: #{tpu_custom_call.1} parent=1 // pred_check_branch
      %9 = sbr.rel (0) target = $region5
    $region4: #{tpu_custom_call.1} parent=1 // pred_region
      %11 = vsyncadd [#allocation3], 0
      %s12 = sshll.u32 %s0, 4
      %s13 = int_to_ptr.hbm [resolvable:$true] %s12
      %s14 = sshll.u32 [#allocation2], 4
      %s15 = int_to_ptr.vmem [resolvable:$true] %s14
      %20 = dma.hbm_to_vmem [thread:$0]  %s13, 4096, %s15, [#allocation3], 128, 128, 8
    $region5: #{tpu_custom_call.1} parent=1 // pred_fallthru
      _
    // Predicated region
    $region6: #{tpu_custom_call.1} parent=1 // pred_check
      _
    $region7: #{tpu_custom_call.1} parent=1 // pred_check_branch
      %22 = sbr.rel (0) target = $region9
    $region8: #{tpu_custom_call.1} parent=1 // pred_region
      %24 = dma.done [#allocation3], 4096
    $region9: #{tpu_custom_call.1} parent=1 // pred_fallthru
      _
    %v25 = vld [vmem:[#allocation2] sm:$0xff]
    %v26 = vld [vmem:[#allocation2 + $0x8] sm:$0xff]
    %v27 = vld [vmem:[#allocation2 + $0x10] sm:$0xff]
    %v28 = vld [vmem:[#allocation2 + $0x18] sm:$0xff]
    %v29 = vld [vmem:[#allocation2 + $0x20] sm:$0xff]
    %v30 = vld [vmem:[#allocation2 + $0x28] sm:$0xff]
    %v31 = vld [vmem:[#allocation2 + $0x30] sm:$0xff]
    %v32 = vld [vmem:[#allocation2 + $0x38] sm:$0xff]
    %v33 = vld [vmem:[#allocation2 + $0x40] sm:$0xff]
    %v34 = vld [vmem:[#allocation2 + $0x48] sm:$0xff]
    %v35 = vld [vmem:[#allocation2 + $0x50] sm:$0xff]
    %v36 = vld [vmem:[#allocation2 + $0x58] sm:$0xff]
    %v37 = vld [vmem:[#allocation2 + $0x60] sm:$0xff]
    %v38 = vld [vmem:[#allocation2 + $0x68] sm:$0xff]
    %v39 = vld [vmem:[#allocation2 + $0x70] sm:$0xff]
    %v40 = vld [vmem:[#allocation2 + $0x78] sm:$0xff]
    %v41 = vld [vmem:[#allocation2 + $0x80] sm:$0xff]
    %v42 = vld [vmem:[#allocation2 + $0x88] sm:$0xff]
    %v43 = vld [vmem:[#allocation2 + $0x90] sm:$0xff]
    %v44 = vld [vmem:[#allocation2 + $0x98] sm:$0xff]
    %v45 = vld [vmem:[#allocation2 + $0xa0] sm:$0xff]
    %v46 = vld [vmem:[#allocation2 + $0xa8] sm:$0xff]
    %v47 = vld [vmem:[#allocation2 + $0xb0] sm:$0xff]
    %v48 = vld [vmem:[#allocation2 + $0xb8] sm:$0xff]
    %v49 = vld [vmem:[#allocation2 + $0xc0] sm:$0xff]
    %v50 = vld [vmem:[#allocation2 + $0xc8] sm:$0xff]
    %v51 = vld [vmem:[#allocation2 + $0xd0] sm:$0xff]
    %v52 = vld [vmem:[#allocation2 + $0xd8] sm:$0xff]
    %v53 = vld [vmem:[#allocation2 + $0xe0] sm:$0xff]
    %v54 = vld [vmem:[#allocation2 + $0xe8] sm:$0xff]
    %v55 = vld [vmem:[#allocation2 + $0xf0] sm:$0xff]
    %v56 = vld [vmem:[#allocation2 + $0xf8] sm:$0xff]
    %v57 = vmul.f32 %v25, %v25
    %v58 = vmul.f32 %v26, %v26
    %v59 = vmul.f32 %v27, %v27
    %v60 = vmul.f32 %v28, %v28
    %v61 = vmul.f32 %v29, %v29
    %v62 = vmul.f32 %v30, %v30
    %v63 = vmul.f32 %v31, %v31
    %v64 = vmul.f32 %v32, %v32
    %v65 = vmul.f32 %v33, %v33
    %v66 = vmul.f32 %v34, %v34
    %v67 = vmul.f32 %v35, %v35
    %v68 = vmul.f32 %v36, %v36
    %v69 = vmul.f32 %v37, %v37
    %v70 = vmul.f32 %v38, %v38
    %v71 = vmul.f32 %v39, %v39
    %v72 = vmul.f32 %v40, %v40
    %v73 = vmul.f32 %v41, %v41
    %v74 = vmul.f32 %v42, %v42
    %v75 = vmul.f32 %v43, %v43
    %v76 = vmul.f32 %v44, %v44
    %v77 = vmul.f32 %v45, %v45
    %v78 = vmul.f32 %v46, %v46
    %v79 = vmul.f32 %v47, %v47
    %v80 = vmul.f32 %v48, %v48
    %v81 = vmul.f32 %v49, %v49
    %v82 = vmul.f32 %v50, %v50
    %v83 = vmul.f32 %v51, %v51
    %v84 = vmul.f32 %v52, %v52
    %v85 = vmul.f32 %v53, %v53
    %v86 = vmul.f32 %v54, %v54
    %v87 = vmul.f32 %v55, %v55
    %v88 = vmul.f32 %v56, %v56
    %89 = vadd.xlane.f32.xlu0 %v57
    %v90 = vpop.xlane.xlu0 %89
    %91 = vadd.xlane.f32.xlu0 %v58
    %v92 = vpop.xlane.xlu0 %91
    %93 = vadd.xlane.f32.xlu0 %v59
    %v94 = vpop.xlane.xlu0 %93
    %95 = vadd.xlane.f32.xlu0 %v60
    %v96 = vpop.xlane.xlu0 %95
    %97 = vadd.xlane.f32.xlu0 %v61
    %v98 = vpop.xlane.xlu0 %97
    %99 = vadd.xlane.f32.xlu0 %v62
    %v100 = vpop.xlane.xlu0 %99
    %101 = vadd.xlane.f32.xlu0 %v63
    %v102 = vpop.xlane.xlu0 %101
    %103 = vadd.xlane.f32.xlu0 %v64
    %v104 = vpop.xlane.xlu0 %103
    %105 = vadd.xlane.f32.xlu0 %v65
    %v106 = vpop.xlane.xlu0 %105
    %107 = vadd.xlane.f32.xlu0 %v66
    %v108 = vpop.xlane.xlu0 %107
    %109 = vadd.xlane.f32.xlu0 %v67
    %v110 = vpop.xlane.xlu0 %109
    %111 = vadd.xlane.f32.xlu0 %v68
    %v112 = vpop.xlane.xlu0 %111
    %113 = vadd.xlane.f32.xlu0 %v69
    %v114 = vpop.xlane.xlu0 %113
    %115 = vadd.xlane.f32.xlu0 %v70
    %v116 = vpop.xlane.xlu0 %115
    %117 = vadd.xlane.f32.xlu0 %v71
    %v118 = vpop.xlane.xlu0 %117
    %119 = vadd.xlane.f32.xlu0 %v72
    %v120 = vpop.xlane.xlu0 %119
    %121 = vadd.xlane.f32.xlu0 %v73
    %v122 = vpop.xlane.xlu0 %121
    %123 = vadd.xlane.f32.xlu0 %v74
    %v124 = vpop.xlane.xlu0 %123
    %125 = vadd.xlane.f32.xlu0 %v75
    %v126 = vpop.xlane.xlu0 %125
    %127 = vadd.xlane.f32.xlu0 %v76
    %v128 = vpop.xlane.xlu0 %127
    %129 = vadd.xlane.f32.xlu0 %v77
    %v130 = vpop.xlane.xlu0 %129
    %131 = vadd.xlane.f32.xlu0 %v78
    %v132 = vpop.xlane.xlu0 %131
    %133 = vadd.xlane.f32.xlu0 %v79
    %v134 = vpop.xlane.xlu0 %133
    %135 = vadd.xlane.f32.xlu0 %v80
    %v136 = vpop.xlane.xlu0 %135
    %137 = vadd.xlane.f32.xlu0 %v81
    %v138 = vpop.xlane.xlu0 %137
    %139 = vadd.xlane.f32.xlu0 %v82
    %v140 = vpop.xlane.xlu0 %139
    %141 = vadd.xlane.f32.xlu0 %v83
    %v142 = vpop.xlane.xlu0 %141
    %143 = vadd.xlane.f32.xlu0 %v84
    %v144 = vpop.xlane.xlu0 %143
    %145 = vadd.xlane.f32.xlu0 %v85
    %v146 = vpop.xlane.xlu0 %145
    %147 = vadd.xlane.f32.xlu0 %v86
    %v148 = vpop.xlane.xlu0 %147
    %149 = vadd.xlane.f32.xlu0 %v87
    %v150 = vpop.xlane.xlu0 %149
    %151 = vadd.xlane.f32.xlu0 %v88
    %v152 = vpop.xlane.xlu0 %151
    %v153 = vrsqrt.pop %v90
    %v154 = vmul.f32 %v153, %v90
    %v155 = vmul.f32 %v154, %v153
    %v156 = vmul.f32 0.5, %v155
    %v157 = vsub.f32 1.5, %v156
    %v158 = vmul.f32 %v153, %v157
    %v159 = vmul.f32 %v90, %v158
    %vm160 = vcmp.eq.f32.partialorder %v90, inf
    %v161 = vsel %vm160, %v90, %v159
    %vm162 = vcmp.eq.f32.partialorder %v90, 0.0
    %v163 = vand.u32 %v90, 2147483648
    %v164 = vsel %vm162, %v163, %v161
    %v165 = vrsqrt.pop %v92
    %v166 = vmul.f32 %v165, %v92
    %v167 = vmul.f32 %v166, %v165
    %v168 = vmul.f32 0.5, %v167
    %v169 = vsub.f32 1.5, %v168
    %v170 = vmul.f32 %v165, %v169
    %v171 = vmul.f32 %v92, %v170
    %vm172 = vcmp.eq.f32.partialorder %v92, inf
    %v173 = vsel %vm172, %v92, %v171
    %vm174 = vcmp.eq.f32.partialorder %v92, 0.0
    %v175 = vand.u32 %v92, 2147483648
    %v176 = vsel %vm174, %v175, %v173
    %v177 = vrsqrt.pop %v94
    %v178 = vmul.f32 %v177, %v94
    %v179 = vmul.f32 %v178, %v177
    %v180 = vmul.f32 0.5, %v179
    %v181 = vsub.f32 1.5, %v180
    %v182 = vmul.f32 %v177, %v181
    %v183 = vmul.f32 %v94, %v182
    %vm184 = vcmp.eq.f32.partialorder %v94, inf
    %v185 = vsel %vm184, %v94, %v183
    %vm186 = vcmp.eq.f32.partialorder %v94, 0.0
    %v187 = vand.u32 %v94, 2147483648
    %v188 = vsel %vm186, %v187, %v185
    %v189 = vrsqrt.pop %v96
    %v190 = vmul.f32 %v189, %v96
    %v191 = vmul.f32 %v190, %v189
    %v192 = vmul.f32 0.5, %v191
    %v193 = vsub.f32 1.5, %v192
    %v194 = vmul.f32 %v189, %v193
    %v195 = vmul.f32 %v96, %v194
    %vm196 = vcmp.eq.f32.partialorder %v96, inf
    %v197 = vsel %vm196, %v96, %v195
    %vm198 = vcmp.eq.f32.partialorder %v96, 0.0
    %v199 = vand.u32 %v96, 2147483648
    %v200 = vsel %vm198, %v199, %v197
    %v201 = vrsqrt.pop %v98
    %v202 = vmul.f32 %v201, %v98
    %v203 = vmul.f32 %v202, %v201
    %v204 = vmul.f32 0.5, %v203
    %v205 = vsub.f32 1.5, %v204
    %v206 = vmul.f32 %v201, %v205
    %v207 = vmul.f32 %v98, %v206
    %vm208 = vcmp.eq.f32.partialorder %v98, inf
    %v209 = vsel %vm208, %v98, %v207
    %vm210 = vcmp.eq.f32.partialorder %v98, 0.0
    %v211 = vand.u32 %v98, 2147483648
    %v212 = vsel %vm210, %v211, %v209
    %v213 = vrsqrt.pop %v100
    %v214 = vmul.f32 %v213, %v100
    %v215 = vmul.f32 %v214, %v213
    %v216 = vmul.f32 0.5, %v215
    %v217 = vsub.f32 1.5, %v216
    %v218 = vmul.f32 %v213, %v217
    %v219 = vmul.f32 %v100, %v218
    %vm220 = vcmp.eq.f32.partialorder %v100, inf
    %v221 = vsel %vm220, %v100, %v219
    %vm222 = vcmp.eq.f32.partialorder %v100, 0.0
    %v223 = vand.u32 %v100, 2147483648
    %v224 = vsel %vm222, %v223, %v221
    %v225 = vrsqrt.pop %v102
    %v226 = vmul.f32 %v225, %v102
    %v227 = vmul.f32 %v226, %v225
    %v228 = vmul.f32 0.5, %v227
    %v229 = vsub.f32 1.5, %v228
    %v230 = vmul.f32 %v225, %v229
    %v231 = vmul.f32 %v102, %v230
    %vm232 = vcmp.eq.f32.partialorder %v102, inf
    %v233 = vsel %vm232, %v102, %v231
    %vm234 = vcmp.eq.f32.partialorder %v102, 0.0
    %v235 = vand.u32 %v102, 2147483648
    %v236 = vsel %vm234, %v235, %v233
    %v237 = vrsqrt.pop %v104
    %v238 = vmul.f32 %v237, %v104
    %v239 = vmul.f32 %v238, %v237
    %v240 = vmul.f32 0.5, %v239
    %v241 = vsub.f32 1.5, %v240
    %v242 = vmul.f32 %v237, %v241
    %v243 = vmul.f32 %v104, %v242
    %vm244 = vcmp.eq.f32.partialorder %v104, inf
    %v245 = vsel %vm244, %v104, %v243
    %vm246 = vcmp.eq.f32.partialorder %v104, 0.0
    %v247 = vand.u32 %v104, 2147483648
    %v248 = vsel %vm246, %v247, %v245
    %v249 = vrsqrt.pop %v106
    %v250 = vmul.f32 %v249, %v106
    %v251 = vmul.f32 %v250, %v249
    %v252 = vmul.f32 0.5, %v251
    %v253 = vsub.f32 1.5, %v252
    %v254 = vmul.f32 %v249, %v253
    %v255 = vmul.f32 %v106, %v254
    %vm256 = vcmp.eq.f32.partialorder %v106, inf
    %v257 = vsel %vm256, %v106, %v255
    %vm258 = vcmp.eq.f32.partialorder %v106, 0.0
    %v259 = vand.u32 %v106, 2147483648
    %v260 = vsel %vm258, %v259, %v257
    %v261 = vrsqrt.pop %v108
    %v262 = vmul.f32 %v261, %v108
    %v263 = vmul.f32 %v262, %v261
    %v264 = vmul.f32 0.5, %v263
    %v265 = vsub.f32 1.5, %v264
    %v266 = vmul.f32 %v261, %v265
    %v267 = vmul.f32 %v108, %v266
    %vm268 = vcmp.eq.f32.partialorder %v108, inf
    %v269 = vsel %vm268, %v108, %v267
    %vm270 = vcmp.eq.f32.partialorder %v108, 0.0
    %v271 = vand.u32 %v108, 2147483648
    %v272 = vsel %vm270, %v271, %v269
    %v273 = vrsqrt.pop %v110
    %v274 = vmul.f32 %v273, %v110
    %v275 = vmul.f32 %v274, %v273
    %v276 = vmul.f32 0.5, %v275
    %v277 = vsub.f32 1.5, %v276
    %v278 = vmul.f32 %v273, %v277
    %v279 = vmul.f32 %v110, %v278
    %vm280 = vcmp.eq.f32.partialorder %v110, inf
    %v281 = vsel %vm280, %v110, %v279
    %vm282 = vcmp.eq.f32.partialorder %v110, 0.0
    %v283 = vand.u32 %v110, 2147483648
    %v284 = vsel %vm282, %v283, %v281
    %v285 = vrsqrt.pop %v112
    %v286 = vmul.f32 %v285, %v112
    %v287 = vmul.f32 %v286, %v285
    %v288 = vmul.f32 0.5, %v287
    %v289 = vsub.f32 1.5, %v288
    %v290 = vmul.f32 %v285, %v289
    %v291 = vmul.f32 %v112, %v290
    %vm292 = vcmp.eq.f32.partialorder %v112, inf
    %v293 = vsel %vm292, %v112, %v291
    %vm294 = vcmp.eq.f32.partialorder %v112, 0.0
    %v295 = vand.u32 %v112, 2147483648
    %v296 = vsel %vm294, %v295, %v293
    %v297 = vrsqrt.pop %v114
    %v298 = vmul.f32 %v297, %v114
    %v299 = vmul.f32 %v298, %v297
    %v300 = vmul.f32 0.5, %v299
    %v301 = vsub.f32 1.5, %v300
    %v302 = vmul.f32 %v297, %v301
    %v303 = vmul.f32 %v114, %v302
    %vm304 = vcmp.eq.f32.partialorder %v114, inf
    %v305 = vsel %vm304, %v114, %v303
    %vm306 = vcmp.eq.f32.partialorder %v114, 0.0
    %v307 = vand.u32 %v114, 2147483648
    %v308 = vsel %vm306, %v307, %v305
    %v309 = vrsqrt.pop %v116
    %v310 = vmul.f32 %v309, %v116
    %v311 = vmul.f32 %v310, %v309
    %v312 = vmul.f32 0.5, %v311
    %v313 = vsub.f32 1.5, %v312
    %v314 = vmul.f32 %v309, %v313
    %v315 = vmul.f32 %v116, %v314
    %vm316 = vcmp.eq.f32.partialorder %v116, inf
    %v317 = vsel %vm316, %v116, %v315
    %vm318 = vcmp.eq.f32.partialorder %v116, 0.0
    %v319 = vand.u32 %v116, 2147483648
    %v320 = vsel %vm318, %v319, %v317
    %v321 = vrsqrt.pop %v118
    %v322 = vmul.f32 %v321, %v118
    %v323 = vmul.f32 %v322, %v321
    %v324 = vmul.f32 0.5, %v323
    %v325 = vsub.f32 1.5, %v324
    %v326 = vmul.f32 %v321, %v325
    %v327 = vmul.f32 %v118, %v326
    %vm328 = vcmp.eq.f32.partialorder %v118, inf
    %v329 = vsel %vm328, %v118, %v327
    %vm330 = vcmp.eq.f32.partialorder %v118, 0.0
    %v331 = vand.u32 %v118, 2147483648
    %v332 = vsel %vm330, %v331, %v329
    %v333 = vrsqrt.pop %v120
    %v334 = vmul.f32 %v333, %v120
    %v335 = vmul.f32 %v334, %v333
    %v336 = vmul.f32 0.5, %v335
    %v337 = vsub.f32 1.5, %v336
    %v338 = vmul.f32 %v333, %v337
    %v339 = vmul.f32 %v120, %v338
    %vm340 = vcmp.eq.f32.partialorder %v120, inf
    %v341 = vsel %vm340, %v120, %v339
    %vm342 = vcmp.eq.f32.partialorder %v120, 0.0
    %v343 = vand.u32 %v120, 2147483648
    %v344 = vsel %vm342, %v343, %v341
    %v345 = vrsqrt.pop %v122
    %v346 = vmul.f32 %v345, %v122
    %v347 = vmul.f32 %v346, %v345
    %v348 = vmul.f32 0.5, %v347
    %v349 = vsub.f32 1.5, %v348
    %v350 = vmul.f32 %v345, %v349
    %v351 = vmul.f32 %v122, %v350
    %vm352 = vcmp.eq.f32.partialorder %v122, inf
    %v353 = vsel %vm352, %v122, %v351
    %vm354 = vcmp.eq.f32.partialorder %v122, 0.0
    %v355 = vand.u32 %v122, 2147483648
    %v356 = vsel %vm354, %v355, %v353
    %v357 = vrsqrt.pop %v124
    %v358 = vmul.f32 %v357, %v124
    %v359 = vmul.f32 %v358, %v357
    %v360 = vmul.f32 0.5, %v359
    %v361 = vsub.f32 1.5, %v360
    %v362 = vmul.f32 %v357, %v361
    %v363 = vmul.f32 %v124, %v362
    %vm364 = vcmp.eq.f32.partialorder %v124, inf
    %v365 = vsel %vm364, %v124, %v363
    %vm366 = vcmp.eq.f32.partialorder %v124, 0.0
    %v367 = vand.u32 %v124, 2147483648
    %v368 = vsel %vm366, %v367, %v365
    %v369 = vrsqrt.pop %v126
    %v370 = vmul.f32 %v369, %v126
    %v371 = vmul.f32 %v370, %v369
    %v372 = vmul.f32 0.5, %v371
    %v373 = vsub.f32 1.5, %v372
    %v374 = vmul.f32 %v369, %v373
    %v375 = vmul.f32 %v126, %v374
    %vm376 = vcmp.eq.f32.partialorder %v126, inf
    %v377 = vsel %vm376, %v126, %v375
    %vm378 = vcmp.eq.f32.partialorder %v126, 0.0
    %v379 = vand.u32 %v126, 2147483648
    %v380 = vsel %vm378, %v379, %v377
    %v381 = vrsqrt.pop %v128
    %v382 = vmul.f32 %v381, %v128
    %v383 = vmul.f32 %v382, %v381
    %v384 = vmul.f32 0.5, %v383
    %v385 = vsub.f32 1.5, %v384
    %v386 = vmul.f32 %v381, %v385
    %v387 = vmul.f32 %v128, %v386
    %vm388 = vcmp.eq.f32.partialorder %v128, inf
    %v389 = vsel %vm388, %v128, %v387
    %vm390 = vcmp.eq.f32.partialorder %v128, 0.0
    %v391 = vand.u32 %v128, 2147483648
    %v392 = vsel %vm390, %v391, %v389
    %v393 = vrsqrt.pop %v130
    %v394 = vmul.f32 %v393, %v130
    %v395 = vmul.f32 %v394, %v393
    %v396 = vmul.f32 0.5, %v395
    %v397 = vsub.f32 1.5, %v396
    %v398 = vmul.f32 %v393, %v397
    %v399 = vmul.f32 %v130, %v398
    %vm400 = vcmp.eq.f32.partialorder %v130, inf
    %v401 = vsel %vm400, %v130, %v399
    %vm402 = vcmp.eq.f32.partialorder %v130, 0.0
    %v403 = vand.u32 %v130, 2147483648
    %v404 = vsel %vm402, %v403, %v401
    %v405 = vrsqrt.pop %v132
    %v406 = vmul.f32 %v405, %v132
    %v407 = vmul.f32 %v406, %v405
    %v408 = vmul.f32 0.5, %v407
    %v409 = vsub.f32 1.5, %v408
    %v410 = vmul.f32 %v405, %v409
    %v411 = vmul.f32 %v132, %v410
    %vm412 = vcmp.eq.f32.partialorder %v132, inf
    %v413 = vsel %vm412, %v132, %v411
    %vm414 = vcmp.eq.f32.partialorder %v132, 0.0
    %v415 = vand.u32 %v132, 2147483648
    %v416 = vsel %vm414, %v415, %v413
    %v417 = vrsqrt.pop %v134
    %v418 = vmul.f32 %v417, %v134
    %v419 = vmul.f32 %v418, %v417
    %v420 = vmul.f32 0.5, %v419
    %v421 = vsub.f32 1.5, %v420
    %v422 = vmul.f32 %v417, %v421
    %v423 = vmul.f32 %v134, %v422
    %vm424 = vcmp.eq.f32.partialorder %v134, inf
    %v425 = vsel %vm424, %v134, %v423
    %vm426 = vcmp.eq.f32.partialorder %v134, 0.0
    %v427 = vand.u32 %v134, 2147483648
    %v428 = vsel %vm426, %v427, %v425
    %v429 = vrsqrt.pop %v136
    %v430 = vmul.f32 %v429, %v136
    %v431 = vmul.f32 %v430, %v429
    %v432 = vmul.f32 0.5, %v431
    %v433 = vsub.f32 1.5, %v432
    %v434 = vmul.f32 %v429, %v433
    %v435 = vmul.f32 %v136, %v434
    %vm436 = vcmp.eq.f32.partialorder %v136, inf
    %v437 = vsel %vm436, %v136, %v435
    %vm438 = vcmp.eq.f32.partialorder %v136, 0.0
    %v439 = vand.u32 %v136, 2147483648
    %v440 = vsel %vm438, %v439, %v437
    %v441 = vrsqrt.pop %v138
    %v442 = vmul.f32 %v441, %v138
    %v443 = vmul.f32 %v442, %v441
    %v444 = vmul.f32 0.5, %v443
    %v445 = vsub.f32 1.5, %v444
    %v446 = vmul.f32 %v441, %v445
    %v447 = vmul.f32 %v138, %v446
    %vm448 = vcmp.eq.f32.partialorder %v138, inf
    %v449 = vsel %vm448, %v138, %v447
    %vm450 = vcmp.eq.f32.partialorder %v138, 0.0
    %v451 = vand.u32 %v138, 2147483648
    %v452 = vsel %vm450, %v451, %v449
    %v453 = vrsqrt.pop %v140
    %v454 = vmul.f32 %v453, %v140
    %v455 = vmul.f32 %v454, %v453
    %v456 = vmul.f32 0.5, %v455
    %v457 = vsub.f32 1.5, %v456
    %v458 = vmul.f32 %v453, %v457
    %v459 = vmul.f32 %v140, %v458
    %vm460 = vcmp.eq.f32.partialorder %v140, inf
    %v461 = vsel %vm460, %v140, %v459
    %vm462 = vcmp.eq.f32.partialorder %v140, 0.0
    %v463 = vand.u32 %v140, 2147483648
    %v464 = vsel %vm462, %v463, %v461
    %v465 = vrsqrt.pop %v142
    %v466 = vmul.f32 %v465, %v142
    %v467 = vmul.f32 %v466, %v465
    %v468 = vmul.f32 0.5, %v467
    %v469 = vsub.f32 1.5, %v468
    %v470 = vmul.f32 %v465, %v469
    %v471 = vmul.f32 %v142, %v470
    %vm472 = vcmp.eq.f32.partialorder %v142, inf
    %v473 = vsel %vm472, %v142, %v471
    %vm474 = vcmp.eq.f32.partialorder %v142, 0.0
    %v475 = vand.u32 %v142, 2147483648
    %v476 = vsel %vm474, %v475, %v473
    %v477 = vrsqrt.pop %v144
    %v478 = vmul.f32 %v477, %v144
    %v479 = vmul.f32 %v478, %v477
    %v480 = vmul.f32 0.5, %v479
    %v481 = vsub.f32 1.5, %v480
    %v482 = vmul.f32 %v477, %v481
    %v483 = vmul.f32 %v144, %v482
    %vm484 = vcmp.eq.f32.partialorder %v144, inf
    %v485 = vsel %vm484, %v144, %v483
    %vm486 = vcmp.eq.f32.partialorder %v144, 0.0
    %v487 = vand.u32 %v144, 2147483648
    %v488 = vsel %vm486, %v487, %v485
    %v489 = vrsqrt.pop %v146
    %v490 = vmul.f32 %v489, %v146
    %v491 = vmul.f32 %v490, %v489
    %v492 = vmul.f32 0.5, %v491
    %v493 = vsub.f32 1.5, %v492
    %v494 = vmul.f32 %v489, %v493
    %v495 = vmul.f32 %v146, %v494
    %vm496 = vcmp.eq.f32.partialorder %v146, inf
    %v497 = vsel %vm496, %v146, %v495
    %vm498 = vcmp.eq.f32.partialorder %v146, 0.0
    %v499 = vand.u32 %v146, 2147483648
    %v500 = vsel %vm498, %v499, %v497
    %v501 = vrsqrt.pop %v148
    %v502 = vmul.f32 %v501, %v148
    %v503 = vmul.f32 %v502, %v501
    %v504 = vmul.f32 0.5, %v503
    %v505 = vsub.f32 1.5, %v504
    %v506 = vmul.f32 %v501, %v505
    %v507 = vmul.f32 %v148, %v506
    %vm508 = vcmp.eq.f32.partialorder %v148, inf
    %v509 = vsel %vm508, %v148, %v507
    %vm510 = vcmp.eq.f32.partialorder %v148, 0.0
    %v511 = vand.u32 %v148, 2147483648
    %v512 = vsel %vm510, %v511, %v509
    %v513 = vrsqrt.pop %v150
    %v514 = vmul.f32 %v513, %v150
    %v515 = vmul.f32 %v514, %v513
    %v516 = vmul.f32 0.5, %v515
    %v517 = vsub.f32 1.5, %v516
    %v518 = vmul.f32 %v513, %v517
    %v519 = vmul.f32 %v150, %v518
    %vm520 = vcmp.eq.f32.partialorder %v150, inf
    %v521 = vsel %vm520, %v150, %v519
    %vm522 = vcmp.eq.f32.partialorder %v150, 0.0
    %v523 = vand.u32 %v150, 2147483648
    %v524 = vsel %vm522, %v523, %v521
    %v525 = vrsqrt.pop %v152
    %v526 = vmul.f32 %v525, %v152
    %v527 = vmul.f32 %v526, %v525
    %v528 = vmul.f32 0.5, %v527
    %v529 = vsub.f32 1.5, %v528
    %v530 = vmul.f32 %v525, %v529
    %v531 = vmul.f32 %v152, %v530
    %vm532 = vcmp.eq.f32.partialorder %v152, inf
    %v533 = vsel %vm532, %v152, %v531
    %vm534 = vcmp.eq.f32.partialorder %v152, 0.0
    %v535 = vand.u32 %v152, 2147483648
    %v536 = vsel %vm534, %v535, %v533
    %v537 = vmax.f32 %v164, 1e-12
    %v538 = vmax.f32 %v176, 1e-12
    %v539 = vmax.f32 %v188, 1e-12
    %v540 = vmax.f32 %v200, 1e-12
    %v541 = vmax.f32 %v212, 1e-12
    %v542 = vmax.f32 %v224, 1e-12
    %v543 = vmax.f32 %v236, 1e-12
    %v544 = vmax.f32 %v248, 1e-12
    %v545 = vmax.f32 %v260, 1e-12
    %v546 = vmax.f32 %v272, 1e-12
    %v547 = vmax.f32 %v284, 1e-12
    %v548 = vmax.f32 %v296, 1e-12
    %v549 = vmax.f32 %v308, 1e-12
    %v550 = vmax.f32 %v320, 1e-12
    %v551 = vmax.f32 %v332, 1e-12
    %v552 = vmax.f32 %v344, 1e-12
    %v553 = vmax.f32 %v356, 1e-12
    %v554 = vmax.f32 %v368, 1e-12
    %v555 = vmax.f32 %v380, 1e-12
    %v556 = vmax.f32 %v392, 1e-12
    %v557 = vmax.f32 %v404, 1e-12
    %v558 = vmax.f32 %v416, 1e-12
    %v559 = vmax.f32 %v428, 1e-12
    %v560 = vmax.f32 %v440, 1e-12
    %v561 = vmax.f32 %v452, 1e-12
    %v562 = vmax.f32 %v464, 1e-12
    %v563 = vmax.f32 %v476, 1e-12
    %v564 = vmax.f32 %v488, 1e-12
    %v565 = vmax.f32 %v500, 1e-12
    %v566 = vmax.f32 %v512, 1e-12
    %v567 = vmax.f32 %v524, 1e-12
    %v568 = vmax.f32 %v536, 1e-12
    %v569 = vrcp.pop %v537
    %v570 = vrcp.pop %v538
    %v571 = vrcp.pop %v539
    %v572 = vrcp.pop %v540
    %v573 = vrcp.pop %v541
    %v574 = vrcp.pop %v542
    %v575 = vrcp.pop %v543
    %v576 = vrcp.pop %v544
    %v577 = vrcp.pop %v545
    %v578 = vrcp.pop %v546
    %v579 = vrcp.pop %v547
    %v580 = vrcp.pop %v548
    %v581 = vrcp.pop %v549
    %v582 = vrcp.pop %v550
    %v583 = vrcp.pop %v551
    %v584 = vrcp.pop %v552
    %v585 = vrcp.pop %v553
    %v586 = vrcp.pop %v554
    %v587 = vrcp.pop %v555
    %v588 = vrcp.pop %v556
    %v589 = vrcp.pop %v557
    %v590 = vrcp.pop %v558
    %v591 = vrcp.pop %v559
    %v592 = vrcp.pop %v560
    %v593 = vrcp.pop %v561
    %v594 = vrcp.pop %v562
    %v595 = vrcp.pop %v563
    %v596 = vrcp.pop %v564
    %v597 = vrcp.pop %v565
    %v598 = vrcp.pop %v566
    %v599 = vrcp.pop %v567
    %v600 = vrcp.pop %v568
    %v601 = vmul.f32 %v25, %v569
    %v602 = vmul.f32 %v26, %v570
    %v603 = vmul.f32 %v27, %v571
    %v604 = vmul.f32 %v28, %v572
    %v605 = vmul.f32 %v29, %v573
    %v606 = vmul.f32 %v30, %v574
    %v607 = vmul.f32 %v31, %v575
    %v608 = vmul.f32 %v32, %v576
    %v609 = vmul.f32 %v33, %v577
    %v610 = vmul.f32 %v34, %v578
    %v611 = vmul.f32 %v35, %v579
    %v612 = vmul.f32 %v36, %v580
    %v613 = vmul.f32 %v37, %v581
    %v614 = vmul.f32 %v38, %v582
    %v615 = vmul.f32 %v39, %v583
    %v616 = vmul.f32 %v40, %v584
    %v617 = vmul.f32 %v41, %v585
    %v618 = vmul.f32 %v42, %v586
    %v619 = vmul.f32 %v43, %v587
    %v620 = vmul.f32 %v44, %v588
    %v621 = vmul.f32 %v45, %v589
    %v622 = vmul.f32 %v46, %v590
    %v623 = vmul.f32 %v47, %v591
    %v624 = vmul.f32 %v48, %v592
    %v625 = vmul.f32 %v49, %v593
    %v626 = vmul.f32 %v50, %v594
    %v627 = vmul.f32 %v51, %v595
    %v628 = vmul.f32 %v52, %v596
    %v629 = vmul.f32 %v53, %v597
    %v630 = vmul.f32 %v54, %v598
    %v631 = vmul.f32 %v55, %v599
    %v632 = vmul.f32 %v56, %v600
    %v633 = vpack.c.bf16 %v601, %v601
    %v634 = vpack.c.bf16 %v602, %v602
    %v635 = vpack.c.bf16 %v603, %v603
    %v636 = vpack.c.bf16 %v604, %v604
    %v637 = vpack.c.bf16 %v605, %v605
    %v638 = vpack.c.bf16 %v606, %v606
    %v639 = vpack.c.bf16 %v607, %v607
    %v640 = vpack.c.bf16 %v608, %v608
    %v641 = vpack.c.bf16 %v609, %v609
    %v642 = vpack.c.bf16 %v610, %v610
    %v643 = vpack.c.bf16 %v611, %v611
    %v644 = vpack.c.bf16 %v612, %v612
    %v645 = vpack.c.bf16 %v613, %v613
    %v646 = vpack.c.bf16 %v614, %v614
    %v647 = vpack.c.bf16 %v615, %v615
    %v648 = vpack.c.bf16 %v616, %v616
    %v649 = vpack.c.bf16 %v617, %v617
    %v650 = vpack.c.bf16 %v618, %v618
    %v651 = vpack.c.bf16 %v619, %v619
    %v652 = vpack.c.bf16 %v620, %v620
    %v653 = vpack.c.bf16 %v621, %v621
    %v654 = vpack.c.bf16 %v622, %v622
    %v655 = vpack.c.bf16 %v623, %v623
    %v656 = vpack.c.bf16 %v624, %v624
    %v657 = vpack.c.bf16 %v625, %v625
    %v658 = vpack.c.bf16 %v626, %v626
    %v659 = vpack.c.bf16 %v627, %v627
    %v660 = vpack.c.bf16 %v628, %v628
    %v661 = vpack.c.bf16 %v629, %v629
    %v662 = vpack.c.bf16 %v630, %v630
    %v663 = vpack.c.bf16 %v631, %v631
    %v664 = vpack.c.bf16 %v632, %v632
    %665 = vst [vmem:[#allocation5] sm:$0xf] %v633
    %666 = vst [vmem:[#allocation5 + $0x4] sm:$0xf] %v634
    %667 = vst [vmem:[#allocation5 + $0x8] sm:$0xf] %v635
    %668 = vst [vmem:[#allocation5 + $0xc] sm:$0xf] %v636
    %669 = vst [vmem:[#allocation5 + $0x10] sm:$0xf] %v637
    %670 = vst [vmem:[#allocation5 + $0x14] sm:$0xf] %v638
    %671 = vst [vmem:[#allocation5 + $0x18] sm:$0xf] %v639
    %672 = vst [vmem:[#allocation5 + $0x1c] sm:$0xf] %v640
    %673 = vst [vmem:[#allocation5 + $0x20] sm:$0xf] %v641
    %674 = vst [vmem:[#allocation5 + $0x24] sm:$0xf] %v642
    %675 = vst [vmem:[#allocation5 + $0x28] sm:$0xf] %v643
    %676 = vst [vmem:[#allocation5 + $0x2c] sm:$0xf] %v644
    %677 = vst [vmem:[#allocation5 + $0x30] sm:$0xf] %v645
    %678 = vst [vmem:[#allocation5 + $0x34] sm:$0xf] %v646
    %679 = vst [vmem:[#allocation5 + $0x38] sm:$0xf] %v647
    %680 = vst [vmem:[#allocation5 + $0x3c] sm:$0xf] %v648
    %681 = vst [vmem:[#allocation5 + $0x40] sm:$0xf] %v649
    %682 = vst [vmem:[#allocation5 + $0x44] sm:$0xf] %v650
    %683 = vst [vmem:[#allocation5 + $0x48] sm:$0xf] %v651
    %684 = vst [vmem:[#allocation5 + $0x4c] sm:$0xf] %v652
    %685 = vst [vmem:[#allocation5 + $0x50] sm:$0xf] %v653
    %686 = vst [vmem:[#allocation5 + $0x54] sm:$0xf] %v654
    %687 = vst [vmem:[#allocation5 + $0x58] sm:$0xf] %v655
    %688 = vst [vmem:[#allocation5 + $0x5c] sm:$0xf] %v656
    %689 = vst [vmem:[#allocation5 + $0x60] sm:$0xf] %v657
    %690 = vst [vmem:[#allocation5 + $0x64] sm:$0xf] %v658
    %691 = vst [vmem:[#allocation5 + $0x68] sm:$0xf] %v659
    %692 = vst [vmem:[#allocation5 + $0x6c] sm:$0xf] %v660
    %693 = vst [vmem:[#allocation5 + $0x70] sm:$0xf] %v661
    %694 = vst [vmem:[#allocation5 + $0x74] sm:$0xf] %v662
    %695 = vst [vmem:[#allocation5 + $0x78] sm:$0xf] %v663
    %696 = vst [vmem:[#allocation5 + $0x7c] sm:$0xf] %v664
    // Predicated region
    $region10: #{tpu_custom_call.1} parent=1 // pred_check
      _
    $region11: #{tpu_custom_call.1} parent=1 // pred_check_branch
      %698 = sbr.rel (0) target = $region13
    $region12: #{tpu_custom_call.1} parent=1 // pred_region
      %700 = vsyncadd [#allocation4], 0
      %s701 = sshll.u32 [#allocation5], 4
      %s702 = int_to_ptr.vmem [resolvable:$true] %s701
      %s703 = sshll.u32 %s1, 4
      %s704 = int_to_ptr.hbm [resolvable:$true] %s703
      %709 = dma.vmem_to_hbm [thread:$0]  %s702, 2048, %s704, [#allocation4], 64, 64, 4
    $region13: #{tpu_custom_call.1} parent=1 // pred_fallthru
      _
    // Predicated region
    $region14: #{tpu_custom_call.1} parent=1 // pred_check
      _
    $region15: #{tpu_custom_call.1} parent=1 // pred_check_branch
      %711 = sbr.rel (0) target = $region17
    $region16: #{tpu_custom_call.1} parent=1 // pred_region
      %713 = dma.done [#allocation4], 2048
    $region17: #{tpu_custom_call.1} parent=1 // pred_fallthru
      _
    %714 = vsyncpa [#allocation3], 1
    %715 = vsyncpa [#allocation4], 1

</llo_original>
